<compile_context>
chip_gen: v7x
topology: tpu7x:2x2x1
jax: 0.10.0
libtpu: 0.0.40
codegen_flags: <defaults>
</compile_context>

<pallas_src>
import math

import jax
import jax.numpy as jnp
from jax.experimental import pallas as pl
from jax.experimental.pallas import tpu as pltpu


# ---------------------------------------------------------------------------
# Materializing copy kernel: one direct HBM -> HBM DMA (no VMEM staging).
# ---------------------------------------------------------------------------
def _hbm_to_hbm_copy_kernel(x_hbm_ref, o_hbm_ref, dma_sem):
    cp = pltpu.make_async_copy(x_hbm_ref, o_hbm_ref, dma_sem)
    cp.start()
    cp.wait()


def _flatten_materialize(x2d: jax.Array) -> jax.Array:
    """Copy the already-flattened (N, F) array into a fresh buffer via DMA."""
    n, feat = x2d.shape
    return pl.pallas_call(
        _hbm_to_hbm_copy_kernel,
        out_shape=jax.ShapeDtypeStruct((n, feat), x2d.dtype),
        in_specs=[pl.BlockSpec(memory_space=pl.ANY)],   # stay in HBM, no auto-DMA
        out_specs=pl.BlockSpec(memory_space=pl.ANY),    # stay in HBM, no auto-DMA
        scratch_shapes=[pltpu.SemaphoreType.DMA],       # completion semaphore
    )(x2d)


# ---------------------------------------------------------------------------
# Public wrapper == torch Flatten.forward
# ---------------------------------------------------------------------------
def flatten_pallas(x: jax.Array, *, materialize: bool = False) -> jax.Array:
    """Equivalent of torch Flatten: (N, d1, d2, ...) -> (N, prod(d_i)).

    materialize=False (default): metadata-only reshape (zero bytes moved).
    materialize=True: additionally produce a fresh buffer via a direct
    HBM->HBM DMA inside a Pallas kernel.
    """
    n = x.shape[0]
    feat = math.prod(x.shape[1:]) if x.ndim > 1 else 1
    # Same row-major semantics as torch .view(-1, F); pure metadata here.
    x2d = jnp.reshape(x, (n, feat))
    if not materialize:
        return x2d
    return _flatten_materialize(x2d)


if __name__ == "__main__":
    key = jax.random.PRNGKey(0)
    # Small NCHW input consistent with a conv-style feature map.
    x = jax.random.normal(key, (2, 4, 16, 16), dtype=jnp.float32)
    y_ref = x.reshape(x.shape[0], -1)

    # Primary (zero-copy, metadata-only) path.
    y = flatten_pallas(x)
    jax.block_until_ready(y)
    assert y.shape == (2, 4 * 16 * 16), y.shape
    assert y.dtype == x.dtype
    assert jnp.array_equal(y, y_ref), "primary (reshape) path mismatch"

    # Materializing path: exercises the Pallas HBM->HBM DMA kernel.
    y_mat = flatten_pallas(x, materialize=True)
    jax.block_until_ready(y_mat)
    assert y_mat.shape == y_ref.shape and y_mat.dtype == x.dtype
    assert jnp.array_equal(y_mat, y_ref), "materializing (DMA copy) path mismatch"

    print("KERNEL_OK")
</pallas_src>

<mosaic_0001>
module attributes {stable_mosaic.version = 11 : i64} {
  func.func @_hbm_to_hbm_copy_kernel(%arg0: memref<2x1024xf32, #tpu.memory_space<any>>, %arg1: memref<2x1024xf32, #tpu.memory_space<any>>, %arg2: memref<!tpu.dma_semaphore, #tpu.memory_space<semaphore_mem>>) attributes {dimension_semantics = [], scalar_prefetch = 0 : i64, scratch_operands = 1 : i64, tpu.core_type = #tpu.core_type<tc>} {
    tpu.enqueue_dma source(%arg0 : memref<2x1024xf32, #tpu.memory_space<any>>) target(%arg1 : memref<2x1024xf32, #tpu.memory_space<any>>) target_semaphore(%arg2 : memref<!tpu.dma_semaphore, #tpu.memory_space<semaphore_mem>>)
    tpu.wait_dma2 semaphore(%arg2 : memref<!tpu.dma_semaphore, #tpu.memory_space<semaphore_mem>>) src(%arg0 : memref<2x1024xf32, #tpu.memory_space<any>>) dst(%arg1 : memref<2x1024xf32, #tpu.memory_space<any>>)
    return
  }
}

</mosaic_0001>

<llo_original>
// kernel: tpu_custom_call.1
$region0: #{tpu_custom_call.1}
  #allocation0 [shape = 'u32[]', space=smem, size = 0x4, offset = 0x4, fixed_abs, tag = 'smem constant byte address 0x4 - core index']
  #allocation1 [shape = 'u32[144,128]{1,0:T(1,128)}', space=vmem, size = 0x12000, scoped, tag = 'internal scratch']
  #allocation2 [shape = 's32[1]{0}', space=sflag, size = 0x4, scoped, tag = 'scratch operand']
  #allocation3 [shape = 's32[]', space=sflag, size = 0x4, offset = 0, fixed_abs, tag = 'sflag constant byte address 0x0 - dummy sync flag']
  #allocation4 [shape = 'u32[0]{0}', space=smem, size = 0, offset = 0, fixed_abs, tag = 'smem constant byte address 0x0 - null']
  %s0 = inlined_call_operand.hbm [shape: f32[2,1024], index: 0, kind: input, shape index: {}]
  %s1 = inlined_call_operand.hbm [shape: f32[2,1024], index: 1, kind: output, shape index: {}]
  %s2 = sld [smem:[#allocation0]]
  $region2: #{tpu_custom_call.1} parent=0
    _
  %s4 = ssub.s32 1, %s2
  %s5 = scalar_select 0, %s4, %s2
  %s7 = sshll.u32 1, 14
  %s8 = sxor.u32 4294967295, %s7
  %s11 = sshll.u32 3, 24
  %s12 = sxor.u32 4294967295, %s11
  %s13 = sand.u32 0, %s12
  %s15 = sor.u32 %s13, 0
  %18 = dma.general %s0, 256, %s1, [#allocation2], [#allocation3], [#allocation4], %s15, 0
  %s19 = smul.u32 2, 1
  %s20 = smul.u32 %s19, 8
  %s21 = sshll.u32 %s20, 4
  %22 = dma.done [#allocation2], %s21
  %23 = vsyncmov [#allocation2]
  %s24 = vpop.sfrf %23
  %p25 = scmp.eq.s32.totalorder %s24, 0
  %p26 = pneg %p25
  %28 = shalt.err (%p26)

</llo_original>
